<compile_context>
chip_gen: v7x
topology: tpu7x:2x2x1
jax: 0.10.0
libtpu: 0.0.40
codegen_flags: <defaults>
</compile_context>

<pallas_src>
import functools

import numpy as np

import jax
import jax.numpy as jnp
from jax.experimental import pallas as pl
from jax.experimental.pallas import tpu as pltpu


_TILE_SEQ_TARGET = 512    # kernel-1 seq-tile; sweep 256-1024 per generation
_TILE_ROWS_TARGET = 512   # kernel-2 row tile (B*SEQ rows)


def _round_up(x, m):
    return (x + m - 1) // m * m


def _pick_tile(n, target):
    # Full extent for small n (the "equals the array dim" escape hatch of the
    # (8,128) rule); otherwise a fixed multiple-of-8 tile, ragged tail handled
    # by Pallas padding (OOB loads padded, OOB stores dropped; elementwise-safe).
    return n if n <= target else target


@functools.lru_cache(maxsize=None)
def _vmem_limit_bytes():
    # Generation-aware VMEM budget: ~3/4 of physical per-core VMEM
    # (v5e/v6e: ~96 of 128 MiB, v7x: ~48 of 64 MiB) leaving compiler headroom.
    try:
        cap = int(pltpu.get_tpu_info().vmem_capacity_bytes)
    except Exception:  # conservative fallback if the query is unavailable
        cap = 128 * 1024 * 1024
    return (cap * 3) // 4


def _compiler_params(grid_rank):
    return pltpu.CompilerParams(
        dimension_semantics=("parallel",) * grid_rank,
        vmem_limit_bytes=_vmem_limit_bytes(),
    )


# ---------------------------------------------------------------------------
# Kernel 1: stacked Q/K/V/lr projection + RoPE (block-halves layout) + sigmoid.
# ---------------------------------------------------------------------------
def qkv_rope_lr_kernel(x_ref, cos_ref, rsin_ref, w_ref, blr_ref,
                       q_ref, k_ref, v_ref, lr_ref, *, dim):
    half = dim // 2
    xb = x_ref[...].astype(jnp.bfloat16)                      # (ts, dim)
    # One stacked MXU matmul: cols [0,dim)=Q, [dim,2dim)=K, [2dim,3dim)=V,
    # [3dim,3dim+lrp)=lr logits (first n_heads cols valid, rest padding).
    slab = jnp.dot(xb, w_ref[...], preferred_element_type=jnp.float32)

    # lr columns are 128-lane padded so this store is a full unmasked vst.
    lr_ref[...] = jax.nn.sigmoid(slab[:, 3 * dim:] + blr_ref[...])

    cos = cos_ref[...].astype(jnp.float32)
    rsin = rsin_ref[...].astype(jnp.float32)   # sin with lo-half sign folded in

    def rope(t):
        # Block-halves layout: rotate_half == swap of the dim/2-wide lo / hi
        # blocks == roll by dim/2 (sign lives in rsin).
        if dim % 256 == 0:
            rot = pltpu.roll(t, half, 1)                       # XLU, lane-aligned
        else:
            rot = jnp.concatenate([t[:, half:], t[:, :half]], axis=-1)
        return t * cos + rot * rsin

    # NOTE: the reference TTTBase applies RoPE to V as well (kept for parity).
    q_ref[...] = rope(slab[:, 0 * dim:1 * dim]).astype(q_ref.dtype)
    k_ref[...] = rope(slab[:, 1 * dim:2 * dim]).astype(k_ref.dtype)
    v_ref[...] = rope(slab[:, 2 * dim:3 * dim]).astype(v_ref.dtype)


def qkv_rope_and_lr(x, cos_bh, rsin_bh, w_stacked_t, blr_pad):
    B, SEQ, dim = x.shape
    n_out = w_stacked_t.shape[1]
    lrp = n_out - 3 * dim
    ts = _pick_tile(SEQ, _TILE_SEQ_TARGET)
    grid = (B, pl.cdiv(SEQ, ts))

    def act_spec(width):
        return pl.BlockSpec((None, ts, width), lambda b, i: (b, i, 0))

    tab_spec = pl.BlockSpec((ts, dim), lambda b, i: (i, 0))
    # Constant index maps: these blocks never move, so one VMEM buffer suffices
    # (default double-buffering would waste 2x the resident-weight space).
    w_spec = pl.BlockSpec((dim, n_out), lambda b, i: (0, 0),
                          pipeline_mode=pl.Buffered(1))
    blr_spec = pl.BlockSpec((1, lrp), lambda b, i: (0, 0),
                            pipeline_mode=pl.Buffered(1))

    out_shape = (
        jax.ShapeDtypeStruct((B, SEQ, dim), jnp.bfloat16),   # q (RoPE applied)
        jax.ShapeDtypeStruct((B, SEQ, dim), jnp.bfloat16),   # k (RoPE applied)
        jax.ShapeDtypeStruct((B, SEQ, dim), jnp.bfloat16),   # v (RoPE applied)
        jax.ShapeDtypeStruct((B, SEQ, lrp), jnp.float32),    # sigmoid(lr logits)
    )
    return pl.pallas_call(
        functools.partial(qkv_rope_lr_kernel, dim=dim),
        grid=grid,
        in_specs=[act_spec(dim), tab_spec, tab_spec, w_spec, blr_spec],
        out_specs=(act_spec(dim), act_spec(dim), act_spec(dim), act_spec(lrp)),
        out_shape=out_shape,
        compiler_params=_compiler_params(2),
    )(x, cos_bh, rsin_bh, w_stacked_t, blr_pad)


# ---------------------------------------------------------------------------
# Kernel 2: post LayerNorm (fused sum / sum-of-squares, f32 stats over a bf16
# stream) + resident pre-transposed bf16 `o` projection.
# ---------------------------------------------------------------------------
def postnorm_o_kernel(h_ref, g_ref, b_ref, wo_ref, out_ref, *, eps, dim):
    h = h_ref[...].astype(jnp.float32)                       # (tile, dim)
    inv_d = 1.0 / dim
    mu = jnp.sum(h, axis=-1, keepdims=True) * inv_d
    msq = jnp.sum(h * h, axis=-1, keepdims=True) * inv_d
    var = jnp.maximum(msq - mu * mu, 0.0)                    # clamp fp error
    hn = (h - mu) * jax.lax.rsqrt(var + eps)
    hn = hn * g_ref[...] + b_ref[...]
    out_ref[...] = jnp.dot(hn.astype(jnp.bfloat16), wo_ref[...],
                           preferred_element_type=jnp.float32
                           ).astype(out_ref.dtype)


def postnorm_and_o(h2d, ln_g, ln_b, wo_t, eps, out_dtype):
    rows, dim = h2d.shape
    tr = _pick_tile(rows, _TILE_ROWS_TARGET)
    grid = (pl.cdiv(rows, tr),)
    row_spec = pl.BlockSpec((tr, dim), lambda i: (i, 0))
    vec_spec = pl.BlockSpec((1, dim), lambda i: (0, 0),
                            pipeline_mode=pl.Buffered(1))
    wo_spec = pl.BlockSpec((dim, dim), lambda i: (0, 0),
                           pipeline_mode=pl.Buffered(1))
    # TODO(synk): N-tile wo with a second grid axis when dim**2 * 2B exceeds
    # the per-generation VMEM budget (dim >~ 3-4k on v7x).
    return pl.pallas_call(
        functools.partial(postnorm_o_kernel, eps=eps, dim=dim),
        grid=grid,
        in_specs=[row_spec, vec_spec, vec_spec, wo_spec],
        out_specs=pl.BlockSpec((tr, dim), lambda i: (i, 0)),
        out_shape=jax.ShapeDtypeStruct((rows, dim), out_dtype),
        compiler_params=_compiler_params(1),
    )(h2d, ln_g.reshape(1, dim), ln_b.reshape(1, dim), wo_t)


# ---------------------------------------------------------------------------
# Wrapper-side (one-time, tiny) layout plumbing.
# ---------------------------------------------------------------------------
def _block_halves_perm(dim, n_heads):
    """perm[c] = head-major feature column for block-halves column c."""
    hd = dim // n_heads
    half = hd // 2
    lo = np.arange(n_heads)[:, None] * hd + np.arange(half)[None, :]
    hi = lo + half
    return np.concatenate([lo.reshape(-1), hi.reshape(-1)])


def prepare_weights(params, dim, n_heads):
    perm = _block_halves_perm(dim, n_heads)
    lrp = max(128, _round_up(n_heads, 128))
    # lr rows padded to 128 so the lr output columns are lane-dense.
    wlr_pad = jnp.zeros((lrp, dim), jnp.float32).at[:n_heads].set(params["wlr"])
    # Row-permute wq/wk/wv so q/k/v come out in block-halves column order.
    w_stack = jnp.concatenate(
        [params["wq"][perm], params["wk"][perm], params["wv"][perm], wlr_pad],
        axis=0)
    w_stacked_t = jnp.transpose(w_stack).astype(jnp.bfloat16)  # (dim, 3*dim+lrp)
    blr_pad = jnp.zeros((1, lrp), jnp.float32).at[0, :n_heads].set(
        params["blr"].reshape(-1))
    # Permute the *input-feature* axis of wo and the LN affine params so the
    # block-halves activation layout never has to be undone; wo output columns
    # stay in the original order.
    wo_t = jnp.transpose(params["wo"][:, perm]).astype(jnp.bfloat16)
    ln_g = params["ln_g"][perm]
    ln_b = params["ln_b"][perm]
    return w_stacked_t, blr_pad, wo_t, ln_g, ln_b


def build_rope_tables(pos_frequencies, n_heads):
    # TODO(synk): apply_rope is external to the provided module; the standard
    # rotate-half convention (pairs (j, j + head_dim/2)) is assumed here.
    # Tables are (SEQ, dim) bf16, laid out in block-halves order, with the
    # lo-half sign pre-folded into the sin table.
    cos = jnp.cos(pos_frequencies)                         # (SEQ, hd//2)
    sin = jnp.sin(pos_frequencies)
    cos_bh = jnp.tile(cos, (1, 2 * n_heads))               # (SEQ, dim)
    rsin_bh = jnp.concatenate([jnp.tile(-sin, (1, n_heads)),
                               jnp.tile(sin, (1, n_heads))], axis=-1)
    return cos_bh.astype(jnp.bfloat16), rsin_bh.astype(jnp.bfloat16)


# ---------------------------------------------------------------------------
# TTTBase.get_learning_rate() terms (consumed only by subclasses'
# compute_mini_batch; kept for forward-pass parity).
# ---------------------------------------------------------------------------
def learning_rate_terms(lr_tokens, base_lr, head_dim, grad_scale_buf,
                        learnable_gs, mini_batch_size):
    """lr_tokens: (B, S_chunk, n_heads), sigmoid already applied in-kernel."""
    B, Sc, H = lr_tokens.shape
    n = Sc // mini_batch_size
    inner = lr_tokens.reshape(B, n, mini_batch_size, H)
    inner = jnp.transpose(inner, (0, 3, 1, 2))[:, :, :, None, :]  # (B,H,n,1,k)
    inner = base_lr * inner / head_dim
    gs = jnp.maximum(grad_scale_buf + learnable_gs, 0.0)[:mini_batch_size]
    gs = jnp.broadcast_to(gs.reshape(1, 1, 1, mini_batch_size, 1),
                          (B, H, n, mini_batch_size, 1))
    return inner, gs


# ---------------------------------------------------------------------------
# Forward.
# ---------------------------------------------------------------------------
def ttt_base_forward(x, pos_frequencies, params, cfg):
    B, SEQ, dim = x.shape
    H = cfg["n_heads"]
    hd = dim // H
    mb = cfg["mini_batch_size"]

    w_stacked_t, blr_pad, wo_t, ln_g, ln_b = prepare_weights(params, dim, H)
    cos_bh, rsin_bh = build_rope_tables(pos_frequencies, H)

    # Kernel 1: bf16 q/k/v (RoPE applied, block-halves layout) + sigmoid(lr).
    q, k, v, lr_pad = qkv_rope_and_lr(x, cos_bh, rsin_bh, w_stacked_t, blr_pad)
    lr_tokens = lr_pad[..., :H]                              # (B, SEQ, H)

    # Learning-rate / gradient-scale terms of get_learning_rate(); only
    # subclasses' compute_mini_batch consumes them (and k, v).
    num_mb, rem = SEQ // mb, SEQ % mb
    if num_mb > 0:
        _ = learning_rate_terms(lr_tokens[:, :num_mb * mb], cfg["base_lr"], hd,
                                params["gradient_scale"],
                                params["learnable_gradient_scale"], mb)
    if rem > 0:
        _ = learning_rate_terms(lr_tokens[:, -rem:], cfg["base_lr"], hd,
                                params["gradient_scale"],
                                params["learnable_gradient_scale"], rem)

    # TODO(synk): compute_mini_batch is @abstractmethod in TTTBase; with the
    # identity inner loop (y_i = Q_i) the ttt()/forward permute+reshape
    # plumbing composes to the identity on Q, so the post-norm input is
    # exactly q (still in block-halves column order — ln/o params were
    # permuted to match, so the final output is in the original feature
    # order).  Subclasses would consume k, v and the lr terms here and need
    # the inverse column permutation when reshaping to (B, H, SEQ, head_dim).
    del k, v

    out2d = postnorm_and_o(q.reshape(B * SEQ, dim), ln_g, ln_b, wo_t,
                           cfg["norm_eps"], out_dtype=x.dtype)
    return out2d.reshape(B, SEQ, dim)


# ---------------------------------------------------------------------------
# Deterministic parameter setup + demo run.
# ---------------------------------------------------------------------------
def make_params(key, dim, n_heads, mini_batch_size):
    ks = jax.random.split(key, 6)
    scale = 0.02
    return {
        "wq": scale * jax.random.normal(ks[0], (dim, dim), jnp.float32),
        "wk": scale * jax.random.normal(ks[1], (dim, dim), jnp.float32),
        "wv": scale * jax.random.normal(ks[2], (dim, dim), jnp.float32),
        "wo": scale * jax.random.normal(ks[3], (dim, dim), jnp.float32),
        # inner_loop_lr_W: (n_heads, 1, dim) -> flattened to (n_heads, dim)
        "wlr": scale * jax.random.normal(ks[4], (n_heads, dim), jnp.float32),
        # inner_loop_lr_b: (n_heads, 1)
        "blr": jnp.zeros((n_heads, 1), jnp.float32),
        "ln_g": jnp.ones((dim,), jnp.float32),
        "ln_b": jnp.zeros((dim,), jnp.float32),
        "gradient_scale": 1.0 / jnp.arange(1, mini_batch_size + 1,
                                           dtype=jnp.float32),
        "learnable_gradient_scale": jnp.zeros((mini_batch_size,), jnp.float32),
        # ttt_norm_weight / ttt_norm_bias: consumed only by compute_mini_batch
        # in subclasses (kept for parity).
        "ttt_norm_weight": jnp.ones((n_heads, dim // n_heads), jnp.float32),
        "ttt_norm_bias": jnp.zeros((n_heads, dim // n_heads), jnp.float32),
    }


if __name__ == "__main__":
    # NOTE: demo shapes are small for correctness; production shapes should use
    # dim a multiple of 128 (v5e) / 256 (v6e, v7x) and head_dim >= 64.
    B, SEQ, dim, n_heads, mb = 2, 10, 32, 4, 4   # head_dim = 8, remainder = 2
    hd = dim // n_heads
    cfg = {"mini_batch_size": mb, "n_heads": n_heads,
           "base_lr": 1.0, "norm_eps": 1e-5}

    key = jax.random.PRNGKey(0)
    kx, kp = jax.random.split(key)
    x = jax.random.normal(kx, (B, SEQ, dim), jnp.float32)
    params = make_params(kp, dim, n_heads, mb)

    # RoPE angle table: (SEQ, head_dim // 2)
    pos = jnp.arange(SEQ, dtype=jnp.float32)
    inv_freq = 1.0 / (10000.0 ** (jnp.arange(0, hd, 2, dtype=jnp.float32) / hd))
    pos_frequencies = pos[:, None] * inv_freq[None, :]

    out = ttt_base_forward(x, pos_frequencies, params, cfg)
    jax.block_until_ready(out)
    assert out.shape == (B, SEQ, dim)
    assert bool(jnp.all(jnp.isfinite(out)))
    print("KERNEL_OK")
</pallas_src>

<mosaic_0001>
module attributes {stable_mosaic.version = 11 : i64} {
  func.func @qkv_rope_lr_kernel(%arg0: i32, %arg1: i32, %arg2: memref<1x10x32xf32, #tpu.memory_space<vmem>>, %arg3: memref<10x32xbf16, #tpu.memory_space<vmem>>, %arg4: memref<10x32xbf16, #tpu.memory_space<vmem>>, %arg5: memref<32x224xbf16, #tpu.memory_space<vmem>>, %arg6: memref<1x128xf32, #tpu.memory_space<vmem>>, %arg7: memref<1x10x32xbf16, #tpu.memory_space<vmem>>, %arg8: memref<1x10x32xbf16, #tpu.memory_space<vmem>>, %arg9: memref<1x10x32xbf16, #tpu.memory_space<vmem>>, %arg10: memref<1x10x128xf32, #tpu.memory_space<vmem>>) attributes {dimension_semantics = [#tpu.dimension_semantics<parallel>, #tpu.dimension_semantics<parallel>], iteration_bounds = array<i64: 2, 1>, scalar_prefetch = 0 : i64, scratch_operands = 0 : i64, tpu.core_type = #tpu.core_type<tc>, window_params = [{transform_indices = @transform_0, window_bounds = array<i64: 1, 10, 32>}, {transform_indices = @transform_1, window_bounds = array<i64: 10, 32>}, {transform_indices = @transform_2, window_bounds = array<i64: 10, 32>}, {pipeline_mode = #tpu.pipeline_mode<synchronous>, transform_indices = @transform_3, window_bounds = array<i64: 32, 224>}, {pipeline_mode = #tpu.pipeline_mode<synchronous>, transform_indices = @transform_4, window_bounds = array<i64: 1, 128>}, {transform_indices = @transform_5, window_bounds = array<i64: 1, 10, 32>}, {transform_indices = @transform_6, window_bounds = array<i64: 1, 10, 32>}, {transform_indices = @transform_7, window_bounds = array<i64: 1, 10, 32>}, {transform_indices = @transform_8, window_bounds = array<i64: 1, 10, 128>}]} {
    %c0 = arith.constant 0 : index
    %c0_0 = arith.constant 0 : index
    %c0_1 = arith.constant 0 : index
    %0 = vector.load %arg2[%c0, %c0_0, %c0_1] : memref<1x10x32xf32, #tpu.memory_space<vmem>>, vector<1x10x32xf32>
    %1 = vector.shape_cast %0 : vector<1x10x32xf32> to vector<10x32xf32>
    %2 = arith.truncf %1 : vector<10x32xf32> to vector<10x32xbf16>
    %c0_2 = arith.constant 0 : index
    %c0_3 = arith.constant 0 : index
    %3 = vector.load %arg5[%c0_2, %c0_3] : memref<32x224xbf16, #tpu.memory_space<vmem>>, vector<32x224xbf16>
    %cst = arith.constant dense<0.000000e+00> : vector<10x224xf32>
    %4 = tpu.matmul %2, %3, %cst {dimension_numbers = #tpu.dot_dimension_numbers<[1], [0], [0], [1], [0, 0, 1, 1], [], []>} : vector<10x32xbf16>, vector<32x224xbf16>, vector<10x224xf32> -> vector<10x224xf32>
    %5 = vector.extract_strided_slice %4 {offsets = [0, 96], sizes = [10, 128], strides = [1, 1]} : vector<10x224xf32> to vector<10x128xf32>
    %c0_4 = arith.constant 0 : index
    %c0_5 = arith.constant 0 : index
    %6 = vector.load %arg6[%c0_4, %c0_5] : memref<1x128xf32, #tpu.memory_space<vmem>>, vector<1x128xf32>
    %7 = vector.broadcast %6 : vector<1x128xf32> to vector<10x128xf32>
    %8 = arith.addf %5, %7 : vector<10x128xf32>
    %9 = arith.negf %8 : vector<10x128xf32>
    %10 = math.exp %9 : vector<10x128xf32>
    %cst_6 = arith.constant 1.000000e+00 : f32
    %11 = vector.broadcast %cst_6 : f32 to vector<10x128xf32>
    %12 = arith.addf %11, %10 : vector<10x128xf32>
    %13 = arith.divf %11, %12 : vector<10x128xf32>
    %c0_7 = arith.constant 0 : index
    %c0_8 = arith.constant 0 : index
    %c0_9 = arith.constant 0 : index
    %14 = vector.load %arg10[%c0_7, %c0_8, %c0_9] : memref<1x10x128xf32, #tpu.memory_space<vmem>>, vector<1x10x128xf32>
    %15 = vector.shape_cast %14 : vector<1x10x128xf32> to vector<10x128xf32>
    %16 = vector.shape_cast %13 : vector<10x128xf32> to vector<1x10x128xf32>
    tpu.vector_store %arg10[%c0_7, %c0_8, %c0_9], %16 {strides = array<i32>} : memref<1x10x128xf32, #tpu.memory_space<vmem>>, vector<1x10x128xf32>,
    %c0_10 = arith.constant 0 : index
    %c0_11 = arith.constant 0 : index
    %17 = vector.load %arg3[%c0_10, %c0_11] : memref<10x32xbf16, #tpu.memory_space<vmem>>, vector<10x32xbf16>
    %18 = arith.extf %17 : vector<10x32xbf16> to vector<10x32xf32>
    %c0_12 = arith.constant 0 : index
    %c0_13 = arith.constant 0 : index
    %19 = vector.load %arg4[%c0_12, %c0_13] : memref<10x32xbf16, #tpu.memory_space<vmem>>, vector<10x32xbf16>
    %20 = arith.extf %19 : vector<10x32xbf16> to vector<10x32xf32>
    %21 = vector.extract_strided_slice %4 {offsets = [0, 0], sizes = [10, 32], strides = [1, 1]} : vector<10x224xf32> to vector<10x32xf32>
    %22 = vector.extract_strided_slice %21 {offsets = [0, 16], sizes = [10, 16], strides = [1, 1]} : vector<10x32xf32> to vector<10x16xf32>
    %23 = vector.extract_strided_slice %21 {offsets = [0, 0], sizes = [10, 16], strides = [1, 1]} : vector<10x32xf32> to vector<10x16xf32>
    %24 = tpu.concatenate %22, %23 in 1 : vector<10x16xf32>, vector<10x16xf32> -> vector<10x32xf32>
    %25 = arith.mulf %21, %18 : vector<10x32xf32>
    %26 = arith.mulf %24, %20 : vector<10x32xf32>
    %27 = arith.addf %25, %26 : vector<10x32xf32>
    %28 = arith.truncf %27 : vector<10x32xf32> to vector<10x32xbf16>
    %c0_14 = arith.constant 0 : index
    %c0_15 = arith.constant 0 : index
    %c0_16 = arith.constant 0 : index
    %29 = vector.load %arg7[%c0_14, %c0_15, %c0_16] : memref<1x10x32xbf16, #tpu.memory_space<vmem>>, vector<1x10x32xbf16>
    %30 = vector.shape_cast %29 : vector<1x10x32xbf16> to vector<10x32xbf16>
    %31 = vector.shape_cast %28 : vector<10x32xbf16> to vector<1x10x32xbf16>
    tpu.vector_store %arg7[%c0_14, %c0_15, %c0_16], %31 {strides = array<i32>} : memref<1x10x32xbf16, #tpu.memory_space<vmem>>, vector<1x10x32xbf16>,
    %32 = vector.extract_strided_slice %4 {offsets = [0, 32], sizes = [10, 32], strides = [1, 1]} : vector<10x224xf32> to vector<10x32xf32>
    %33 = vector.extract_strided_slice %32 {offsets = [0, 16], sizes = [10, 16], strides = [1, 1]} : vector<10x32xf32> to vector<10x16xf32>
    %34 = vector.extract_strided_slice %32 {offsets = [0, 0], sizes = [10, 16], strides = [1, 1]} : vector<10x32xf32> to vector<10x16xf32>
    %35 = tpu.concatenate %33, %34 in 1 : vector<10x16xf32>, vector<10x16xf32> -> vector<10x32xf32>
    %36 = arith.mulf %32, %18 : vector<10x32xf32>
    %37 = arith.mulf %35, %20 : vector<10x32xf32>
    %38 = arith.addf %36, %37 : vector<10x32xf32>
    %39 = arith.truncf %38 : vector<10x32xf32> to vector<10x32xbf16>
    %c0_17 = arith.constant 0 : index
    %c0_18 = arith.constant 0 : index
    %c0_19 = arith.constant 0 : index
    %40 = vector.load %arg8[%c0_17, %c0_18, %c0_19] : memref<1x10x32xbf16, #tpu.memory_space<vmem>>, vector<1x10x32xbf16>
    %41 = vector.shape_cast %40 : vector<1x10x32xbf16> to vector<10x32xbf16>
    %42 = vector.shape_cast %39 : vector<10x32xbf16> to vector<1x10x32xbf16>
    tpu.vector_store %arg8[%c0_17, %c0_18, %c0_19], %42 {strides = array<i32>} : memref<1x10x32xbf16, #tpu.memory_space<vmem>>, vector<1x10x32xbf16>,
    %43 = vector.extract_strided_slice %4 {offsets = [0, 64], sizes = [10, 32], strides = [1, 1]} : vector<10x224xf32> to vector<10x32xf32>
    %44 = vector.extract_strided_slice %43 {offsets = [0, 16], sizes = [10, 16], strides = [1, 1]} : vector<10x32xf32> to vector<10x16xf32>
    %45 = vector.extract_strided_slice %43 {offsets = [0, 0], sizes = [10, 16], strides = [1, 1]} : vector<10x32xf32> to vector<10x16xf32>
    %46 = tpu.concatenate %44, %45 in 1 : vector<10x16xf32>, vector<10x16xf32> -> vector<10x32xf32>
    %47 = arith.mulf %43, %18 : vector<10x32xf32>
    %48 = arith.mulf %46, %20 : vector<10x32xf32>
    %49 = arith.addf %47, %48 : vector<10x32xf32>
    %50 = arith.truncf %49 : vector<10x32xf32> to vector<10x32xbf16>
    %c0_20 = arith.constant 0 : index
    %c0_21 = arith.constant 0 : index
    %c0_22 = arith.constant 0 : index
    %51 = vector.load %arg9[%c0_20, %c0_21, %c0_22] : memref<1x10x32xbf16, #tpu.memory_space<vmem>>, vector<1x10x32xbf16>
    %52 = vector.shape_cast %51 : vector<1x10x32xbf16> to vector<10x32xbf16>
    %53 = vector.shape_cast %50 : vector<10x32xbf16> to vector<1x10x32xbf16>
    tpu.vector_store %arg9[%c0_20, %c0_21, %c0_22], %53 {strides = array<i32>} : memref<1x10x32xbf16, #tpu.memory_space<vmem>>, vector<1x10x32xbf16>,
    return
  }
  func.func @transform_0(%arg0: i32, %arg1: i32) -> (i32, i32, i32) {
    %c0_i32 = arith.constant 0 : i32
    %c0_i32_0 = arith.constant 0 : i32
    return %arg0, %arg1, %c0_i32 : i32, i32, i32
  }
  func.func @transform_1(%arg0: i32, %arg1: i32) -> (i32, i32) {
    %c0_i32 = arith.constant 0 : i32
    %c0_i32_0 = arith.constant 0 : i32
    return %arg1, %c0_i32 : i32, i32
  }
  func.func @transform_2(%arg0: i32, %arg1: i32) -> (i32, i32) {
    %c0_i32 = arith.constant 0 : i32
    %c0_i32_0 = arith.constant 0 : i32
    return %arg1, %c0_i32 : i32, i32
  }
  func.func @transform_3(%arg0: i32, %arg1: i32) -> (i32, i32) {
    %c0_i32 = arith.constant 0 : i32
    %c0_i32_0 = arith.constant 0 : i32
    %c0_i32_1 = arith.constant 0 : i32
    return %c0_i32, %c0_i32_0 : i32, i32
  }
  func.func @transform_4(%arg0: i32, %arg1: i32) -> (i32, i32) {
    %c0_i32 = arith.constant 0 : i32
    %c0_i32_0 = arith.constant 0 : i32
    %c0_i32_1 = arith.constant 0 : i32
    return %c0_i32, %c0_i32_0 : i32, i32
  }
  func.func @transform_5(%arg0: i32, %arg1: i32) -> (i32, i32, i32) {
    %c0_i32 = arith.constant 0 : i32
    %c0_i32_0 = arith.constant 0 : i32
    return %arg0, %arg1, %c0_i32 : i32, i32, i32
  }
  func.func @transform_6(%arg0: i32, %arg1: i32) -> (i32, i32, i32) {
    %c0_i32 = arith.constant 0 : i32
    %c0_i32_0 = arith.constant 0 : i32
    return %arg0, %arg1, %c0_i32 : i32, i32, i32
  }
  func.func @transform_7(%arg0: i32, %arg1: i32) -> (i32, i32, i32) {
    %c0_i32 = arith.constant 0 : i32
    %c0_i32_0 = arith.constant 0 : i32
    return %arg0, %arg1, %c0_i32 : i32, i32, i32
  }
  func.func @transform_8(%arg0: i32, %arg1: i32) -> (i32, i32, i32) {
    %c0_i32 = arith.constant 0 : i32
    %c0_i32_0 = arith.constant 0 : i32
    return %arg0, %arg1, %c0_i32 : i32, i32, i32
  }
}

</mosaic_0001>

<llo_original>
// kernel: tpu_custom_call.1
$region0: #{tpu_custom_call.1}
  #allocation0 [shape = 'u32[]', space=smem, size = 0x4, offset = 0x4, fixed_abs, tag = 'smem constant byte address 0x4 - core index']
  #allocation1 [shape = 'u32[144,128]{1,0:T(1,128)}', space=vmem, size = 0x12000, scoped, tag = 'internal scratch']
  %s0 = inlined_call_operand.hbm [shape: f32[2,10,32], index: 0, kind: input, shape index: {}]
  %s1 = inlined_call_operand.hbm [shape: bf16[10,32], index: 1, kind: input, shape index: {}]
  %s2 = inlined_call_operand.hbm [shape: bf16[10,32], index: 2, kind: input, shape index: {}]
  %s3 = inlined_call_operand.hbm [shape: bf16[32,224], index: 3, kind: input, shape index: {}]
  %s4 = inlined_call_operand.hbm [shape: f32[1,128], index: 4, kind: input, shape index: {}]
  %s5 = inlined_call_operand.hbm [shape: bf16[2,10,32], index: 5, kind: output, shape index: {0}]
  %s6 = inlined_call_operand.hbm [shape: bf16[2,10,32], index: 6, kind: output, shape index: {1}]
  %s7 = inlined_call_operand.hbm [shape: bf16[2,10,32], index: 7, kind: output, shape index: {2}]
  %s8 = inlined_call_operand.hbm [shape: f32[2,10,128], index: 8, kind: output, shape index: {3}]
  %9 = xla_tuple %s5, %s6, %s7, %s8
  %s10 = sld [smem:[#allocation0]]
  $region97: #{tpu_custom_call.1} parent=0
    _
  %s12 = ssub.s32 1, %s10
  %s13 = scalar_select 0, %s12, %s10
  $region1: #{tpu_custom_call.1} parent=0
    #allocation2 [shape = 'u8[16384]{0}', space=vmem, size = 0x4000, scoped, tag = 'input window, operand 0']
    #allocation3 [shape = 's32[2]{0}', space=sflag, size = 0x8, scoped, tag = 'scoped memory for tpu_custom_call.1']
    #allocation4 [shape = 's32[2]{0}', space=sflag, size = 0x8, scoped, tag = 'scoped memory for tpu_custom_call.1']
    #allocation5 [shape = 'u8[4096]{0}', space=vmem, size = 0x1000, scoped, tag = 'input window, operand 1, single buffered']
    #allocation6 [shape = 's32[1]{0}', space=sflag, size = 0x4, scoped, tag = 'scoped memory for tpu_custom_call.1']
    #allocation7 [shape = 'u8[4096]{0}', space=vmem, size = 0x1000, scoped, tag = 'input window, operand 2, single buffered']
    #allocation8 [shape = 'u8[16384]{0}', space=vmem, size = 0x4000, scoped, tag = 'input window, operand 3, single buffered']
    #allocation9 [shape = 's32[1]{0}', space=sflag, size = 0x4, scoped, tag = 'scoped memory for tpu_custom_call.1']
    #allocation10 [shape = 'u8[512]{0}', space=vmem, size = 0x400, scoped, tag = 'input window, operand 4, single buffered']
    #allocation11 [shape = 'u8[8192]{0}', space=vmem, size = 0x2000, scoped, tag = 'output window, operand 0']
    #allocation12 [shape = 'u8[8192]{0}', space=vmem, size = 0x2000, scoped, tag = 'output window, operand 1']
    #allocation13 [shape = 's32[2]{0}', space=sflag, size = 0x8, scoped, tag = 'scoped memory for tpu_custom_call.1']
    #allocation14 [shape = 'u8[8192]{0}', space=vmem, size = 0x2000, scoped, tag = 'output window, operand 2']
    #allocation15 [shape = 'u8[16384]{0}', space=vmem, size = 0x4000, scoped, tag = 'output window, operand 3']
    #allocation16 [shape = 's32[2]{0}', space=sflag, size = 0x8, scoped, tag = 'scoped memory for tpu_custom_call.1']
    %14 = vsyncpa [#allocation3], 0
    %s15 = scalar_lea.sflag [#allocation3], 1
    %16 = vsyncpa %s15, 0
    %17 = vsyncpa [#allocation6], 0
    %18 = vsyncpa [#allocation9], 0
    %19 = vsyncpa [#allocation4], 0
    %s20 = scalar_lea.sflag [#allocation4], 1
    %21 = vsyncpa %s20, 0
    %22 = vsyncpa [#allocation13], 0
    %s23 = scalar_lea.sflag [#allocation13], 1
    %24 = vsyncpa %s23, 0
    %25 = vsyncpa [#allocation16], 0
    %s26 = scalar_lea.sflag [#allocation16], 1
    %27 = vsyncpa %s26, 0
    loop: start=0, step=1, limit=4
    $region2: #{tpu_custom_call.1} parent=1 // loop_pre_header
      _
    $region3: #{tpu_custom_call.1} parent=1 // loop_header
      %s29 = sphi 0, %s33
      %p30 = scmp.ge.s32.totalorder %s29, 4
      %s36 = sphi 0, %s48
      %s37 = sphi 0, %s44
      %s38 = sphi 0, %s36
      %s39 = sphi 0, %s37
      %s40 = sphi 0, %s38
      %s41 = sphi 0, %s39
      %s53 = sphi 0, %s55
      %s56 = sphi 0, %s53
      %s57 = sphi 0, %s56
      %s73 = sphi 0, %s57
      %s79 = sphi 0, %s81
      %s82 = sphi 0, %s79
      %s83 = sphi 0, %s82
      %s99 = sphi 0, %s83
      %s105 = sphi 0, %s107
      %s108 = sphi 0, %s105
      %s109 = sphi 0, %s108
      %s125 = sphi 0, %s109
      %s129 = sphi 0, %s129
      %s131 = sphi 0, %s129
      %s132 = sphi 0, %s131
      %s146 = sphi 0, %s132
      %s150 = sphi 0, %s150
      %s152 = sphi 0, %s150
      %s153 = sphi 0, %s152
      %s167 = sphi 0, %s153
      %s175 = sphi 0, %s177
      %s178 = sphi 0, %s175
      %s179 = sphi 0, %s178
      %s195 = sphi 0, %s179
      %s203 = sphi 0, %s205
      %s206 = sphi 0, %s203
      %s207 = sphi 0, %s206
      %s223 = sphi 0, %s207
      %s231 = sphi 0, %s233
      %s234 = sphi 0, %s231
      %s235 = sphi 0, %s234
      %s251 = sphi 0, %s235
      %s259 = sphi 0, %s261
      %s262 = sphi 0, %s259
      %s263 = sphi 0, %s262
      %s279 = sphi 0, %s263
    $region4: #{tpu_custom_call.1} parent=1 // loop_header_branch
      %32 = sbr.rel (%p30) target = $region8
    $region5: #{tpu_custom_call.1} parent=1 // loop_body
      %s34 = ssub.s32 %s29, 1
      %s35 = ssub.s32 %s29, 2
      %s42 = sadd.s32 1, %s37
      %p43 = scmp.ge.s32.totalorder %s42, 1
      %s44 = scalar_select %p43, 0, %s42
      %s45 = sadd.s32 1, %s36
      %s46 = scalar_select %p43, %s45, %s36
      %p47 = scmp.ge.s32.totalorder %s46, 2
      %s48 = scalar_select %p47, 0, %s46
      %s49 = ssub.s32 %s36, %s48
      %s50 = ssub.s32 %s37, %s44
      %s51 = sor.u32 %s49, %s50
      %p52 = scmp.eq.s32.totalorder %s51, 0
      %s54 = sadd.s32 %s53, 1
      %s55 = scalar_select %p52, %s53, %s54
      %p58 = pneg %p52
      %p59 = scmp.eq.s32.totalorder %s29, 1
      %p60 = por %p58, %p59
      %p61 = scmp.ne.s32.totalorder %s53, %s56
      %p62 = scmp.eq.s32.totalorder %s29, 0
      %p63 = por %p61, %p62
      %p64 = scmp.ne.s32.totalorder %s53, %s56
      %p65 = scmp.eq.s32.totalorder %s34, 1
      %p66 = por %p64, %p65
      %p67 = scmp.ne.s32.totalorder %s56, %s57
      %p68 = scmp.eq.s32.totalorder %s34, 0
      %p69 = por %p67, %p68
      %p70 = scmp.ne.s32.totalorder %s56, %s57
      %p71 = scmp.eq.s32.totalorder %s35, 1
      %p72 = por %p70, %p71
      %p74 = scmp.ne.s32.totalorder %s57, %s73
      %p75 = scmp.eq.s32.totalorder %s35, 0
      %p76 = por %p74, %p75
      %s77 = ssub.s32 %s37, %s44
      %p78 = scmp.eq.s32.totalorder %s77, 0
      %s80 = sadd.s32 %s79, 1
      %s81 = scalar_select %p78, %s79, %s80
      %p84 = pneg %p78
      %p85 = scmp.eq.s32.totalorder %s29, 1
      %p86 = por %p84, %p85
      %p87 = scmp.ne.s32.totalorder %s79, %s82
      %p88 = scmp.eq.s32.totalorder %s29, 0
      %p89 = por %p87, %p88
      %p90 = scmp.ne.s32.totalorder %s79, %s82
      %p91 = scmp.eq.s32.totalorder %s34, 1
      %p92 = por %p90, %p91
      %p93 = scmp.ne.s32.totalorder %s82, %s83
      %p94 = scmp.eq.s32.totalorder %s34, 0
      %p95 = por %p93, %p94
      %p96 = scmp.ne.s32.totalorder %s82, %s83
      %p97 = scmp.eq.s32.totalorder %s35, 1
      %p98 = por %p96, %p97
      %p100 = scmp.ne.s32.totalorder %s83, %s99
      %p101 = scmp.eq.s32.totalorder %s35, 0
      %p102 = por %p100, %p101
      %s103 = ssub.s32 %s37, %s44
      %p104 = scmp.eq.s32.totalorder %s103, 0
      %s106 = sadd.s32 %s105, 1
      %s107 = scalar_select %p104, %s105, %s106
      %p110 = pneg %p104
      %p111 = scmp.eq.s32.totalorder %s29, 1
      %p112 = por %p110, %p111
      %p113 = scmp.ne.s32.totalorder %s105, %s108
      %p114 = scmp.eq.s32.totalorder %s29, 0
      %p115 = por %p113, %p114
      %p116 = scmp.ne.s32.totalorder %s105, %s108
      %p117 = scmp.eq.s32.totalorder %s34, 1
      %p118 = por %p116, %p117
      %p119 = scmp.ne.s32.totalorder %s108, %s109
      %p120 = scmp.eq.s32.totalorder %s34, 0
      %p121 = por %p119, %p120
      %p122 = scmp.ne.s32.totalorder %s108, %s109
      %p123 = scmp.eq.s32.totalorder %s35, 1
      %p124 = por %p122, %p123
      %p126 = scmp.ne.s32.totalorder %s109, %s125
      %p127 = scmp.eq.s32.totalorder %s35, 0
      %p128 = por %p126, %p127
      %s130 = sadd.s32 %s129, 1
      %p133 = scmp.eq.s32.totalorder %s29, 1
      %p134 = scmp.ne.s32.totalorder %s129, %s131
      %p135 = scmp.eq.s32.totalorder %s29, 0
      %p136 = por %p134, %p135
      %p137 = scmp.ne.s32.totalorder %s129, %s131
      %p138 = scmp.eq.s32.totalorder %s34, 1
      %p139 = por %p137, %p138
      %p140 = scmp.ne.s32.totalorder %s131, %s132
      %p141 = scmp.eq.s32.totalorder %s34, 0
      %p142 = por %p140, %p141
      %p143 = scmp.ne.s32.totalorder %s131, %s132
      %p144 = scmp.eq.s32.totalorder %s35, 1
      %p145 = por %p143, %p144
      %p147 = scmp.ne.s32.totalorder %s132, %s146
      %p148 = scmp.eq.s32.totalorder %s35, 0
      %p149 = por %p147, %p148
      %s151 = sadd.s32 %s150, 1
      %p154 = scmp.eq.s32.totalorder %s29, 1
      %p155 = scmp.ne.s32.totalorder %s150, %s152
      %p156 = scmp.eq.s32.totalorder %s29, 0
      %p157 = por %p155, %p156
      %p158 = scmp.ne.s32.totalorder %s150, %s152
      %p159 = scmp.eq.s32.totalorder %s34, 1
      %p160 = por %p158, %p159
      %p161 = scmp.ne.s32.totalorder %s152, %s153
      %p162 = scmp.eq.s32.totalorder %s34, 0
      %p163 = por %p161, %p162
      %p164 = scmp.ne.s32.totalorder %s152, %s153
      %p165 = scmp.eq.s32.totalorder %s35, 1
      %p166 = por %p164, %p165
      %p168 = scmp.ne.s32.totalorder %s153, %s167
      %p169 = scmp.eq.s32.totalorder %s35, 0
      %p170 = por %p168, %p169
      %s171 = ssub.s32 %s36, %s48
      %s172 = ssub.s32 %s37, %s44
      %s173 = sor.u32 %s171, %s172
      %p174 = scmp.eq.s32.totalorder %s173, 0
      %s176 = sadd.s32 %s175, 1
      %s177 = scalar_select %p174, %s175, %s176
      %p180 = pneg %p174
      %p181 = scmp.eq.s32.totalorder %s29, 1
      %p182 = por %p180, %p181
      %p183 = scmp.ne.s32.totalorder %s175, %s178
      %p184 = scmp.eq.s32.totalorder %s29, 0
      %p185 = por %p183, %p184
      %p186 = scmp.ne.s32.totalorder %s175, %s178
      %p187 = scmp.eq.s32.totalorder %s34, 1
      %p188 = por %p186, %p187
      %p189 = scmp.ne.s32.totalorder %s178, %s179
      %p190 = scmp.eq.s32.totalorder %s34, 0
      %p191 = por %p189, %p190
      %p192 = scmp.ne.s32.totalorder %s178, %s179
      %p193 = scmp.eq.s32.totalorder %s35, 1
      %p194 = por %p192, %p193
      %p196 = scmp.ne.s32.totalorder %s179, %s195
      %p197 = scmp.eq.s32.totalorder %s35, 0
      %p198 = por %p196, %p197
      %s199 = ssub.s32 %s36, %s48
      %s200 = ssub.s32 %s37, %s44
      %s201 = sor.u32 %s199, %s200
      %p202 = scmp.eq.s32.totalorder %s201, 0
      %s204 = sadd.s32 %s203, 1
      %s205 = scalar_select %p202, %s203, %s204
      %p208 = pneg %p202
      %p209 = scmp.eq.s32.totalorder %s29, 1
      %p210 = por %p208, %p209
      %p211 = scmp.ne.s32.totalorder %s203, %s206
      %p212 = scmp.eq.s32.totalorder %s29, 0
      %p213 = por %p211, %p212
      %p214 = scmp.ne.s32.totalorder %s203, %s206
      %p215 = scmp.eq.s32.totalorder %s34, 1
      %p216 = por %p214, %p215
      %p217 = scmp.ne.s32.totalorder %s206, %s207
      %p218 = scmp.eq.s32.totalorder %s34, 0
      %p219 = por %p217, %p218
      %p220 = scmp.ne.s32.totalorder %s206, %s207
      %p221 = scmp.eq.s32.totalorder %s35, 1
      %p222 = por %p220, %p221
      %p224 = scmp.ne.s32.totalorder %s207, %s223
      %p225 = scmp.eq.s32.totalorder %s35, 0
      %p226 = por %p224, %p225
      %s227 = ssub.s32 %s36, %s48
      %s228 = ssub.s32 %s37, %s44
      %s229 = sor.u32 %s227, %s228
      %p230 = scmp.eq.s32.totalorder %s229, 0
      %s232 = sadd.s32 %s231, 1
      %s233 = scalar_select %p230, %s231, %s232
      %p236 = pneg %p230
      %p237 = scmp.eq.s32.totalorder %s29, 1
      %p238 = por %p236, %p237
      %p239 = scmp.ne.s32.totalorder %s231, %s234
      %p240 = scmp.eq.s32.totalorder %s29, 0
      %p241 = por %p239, %p240
      %p242 = scmp.ne.s32.totalorder %s231, %s234
      %p243 = scmp.eq.s32.totalorder %s34, 1
      %p244 = por %p242, %p243
      %p245 = scmp.ne.s32.totalorder %s234, %s235
      %p246 = scmp.eq.s32.totalorder %s34, 0
      %p247 = por %p245, %p246
      %p248 = scmp.ne.s32.totalorder %s234, %s235
      %p249 = scmp.eq.s32.totalorder %s35, 1
      %p250 = por %p248, %p249
      %p252 = scmp.ne.s32.totalorder %s235, %s251
      %p253 = scmp.eq.s32.totalorder %s35, 0
      %p254 = por %p252, %p253
      %s255 = ssub.s32 %s36, %s48
      %s256 = ssub.s32 %s37, %s44
      %s257 = sor.u32 %s255, %s256
      %p258 = scmp.eq.s32.totalorder %s257, 0
      %s260 = sadd.s32 %s259, 1
      %s261 = scalar_select %p258, %s259, %s260
      %p264 = pneg %p258
      %p265 = scmp.eq.s32.totalorder %s29, 1
      %p266 = por %p264, %p265
      %p267 = scmp.ne.s32.totalorder %s259, %s262
      %p268 = scmp.eq.s32.totalorder %s29, 0
      %p269 = por %p267, %p268
      %p270 = scmp.ne.s32.totalorder %s259, %s262
      %p271 = scmp.eq.s32.totalorder %s34, 1
      %p272 = por %p270, %p271
      %p273 = scmp.ne.s32.totalorder %s262, %s263
      %p274 = scmp.eq.s32.totalorder %s34, 0
      %p275 = por %p273, %p274
      %p276 = scmp.ne.s32.totalorder %s262, %s263
      %p277 = scmp.eq.s32.totalorder %s35, 1
      %p278 = por %p276, %p277
      %p280 = scmp.ne.s32.totalorder %s263, %s279
      %p281 = scmp.eq.s32.totalorder %s35, 0
      %p282 = por %p280, %p281
      %p283 = scmp.le.s32.totalorder 1, %s29
      %p284 = scmp.lt.s32.totalorder %s29, 3
      %p285 = pnand %p283, %p284
      %p286 = pneg %p285
      // Predicated region
      $region9: #{tpu_custom_call.1} parent=5 // pred_check
        _
      $region10: #{tpu_custom_call.1} parent=5 // pred_check_branch
        %288 = sbr.rel (%p285) target = $region12
      $region11: #{tpu_custom_call.1} parent=5 // pred_region
        %s289 = ssub.s32 %s29, 1
        // Predicated region
        $region13: #{tpu_custom_call.1} parent=11 // pred_check
          %p290 = pneg %p95
        $region14: #{tpu_custom_call.1} parent=11 // pred_check_branch
          %292 = sbr.rel (%p290) target = $region16
        $region15: #{tpu_custom_call.1} parent=11 // pred_region
          %s293 = smul.u32 2, %s39
          %s295 = ssub.s32 128, 128
          %296 = vsyncadd [#allocation6], %s295
          %s297 = smul.addr %s293, 64
          %s298 = scalar_lea.hbm %s1, %s297
          %s299 = sshll.u32 [#allocation5], 4
          %s300 = int_to_ptr.vmem [resolvable:$true] %s299
          %305 = dma.hbm_to_vmem [thread:$0]  %s298, 128, %s300, [#allocation6], 64, 64, 4
        $region16: #{tpu_custom_call.1} parent=11 // pred_fallthru
          _
        // Predicated region
        $region17: #{tpu_custom_call.1} parent=11 // pred_check
          %p306 = pneg %p121
        $region18: #{tpu_custom_call.1} parent=11 // pred_check_branch
          %308 = sbr.rel (%p306) target = $region20
        $region19: #{tpu_custom_call.1} parent=11 // pred_region
          %s309 = smul.u32 2, %s39
          %s311 = ssub.s32 128, 128
          %312 = vsyncadd [#allocation6], %s311
          %s313 = smul.addr %s309, 64
          %s314 = scalar_lea.hbm %s2, %s313
          %s315 = sshll.u32 [#allocation7], 4
          %s316 = int_to_ptr.vmem [resolvable:$true] %s315
          %321 = dma.hbm_to_vmem [thread:$0]  %s314, 128, %s316, [#allocation6], 64, 64, 4
        $region20: #{tpu_custom_call.1} parent=11 // pred_fallthru
          _
        // Predicated region
        $region21: #{tpu_custom_call.1} parent=11 // pred_check
          %p322 = pneg %p142
        $region22: #{tpu_custom_call.1} parent=11 // pred_check_branch
          %324 = sbr.rel (%p322) target = $region24
        $region23: #{tpu_custom_call.1} parent=11 // pred_region
          %s326 = ssub.s32 512, 512
          %327 = vsyncadd [#allocation9], %s326
          %s328 = sshll.u32 [#allocation8], 4
          %s329 = int_to_ptr.vmem [resolvable:$true] %s328
          %334 = dma.hbm_to_vmem [thread:$0]  %s3, 512, %s329, [#allocation9], 128, 128, 8
        $region24: #{tpu_custom_call.1} parent=11 // pred_fallthru
          _
        // Predicated region
        $region25: #{tpu_custom_call.1} parent=11 // pred_check
          %p335 = pneg %p163
        $region26: #{tpu_custom_call.1} parent=11 // pred_check_branch
          %337 = sbr.rel (%p335) target = $region28
        $region27: #{tpu_custom_call.1} parent=11 // pred_region
          %s339 = ssub.s32 16, 16
          %340 = vsyncadd [#allocation9], %s339
          %s342 = sshll.u32 [#allocation10], 4
          %s343 = int_to_ptr.vmem [resolvable:$true] %s342
          %345 = dma.hbm_to_vmem [thread:$0]  %s4, 16, %s343, [#allocation9]
        $region28: #{tpu_custom_call.1} parent=11 // pred_fallthru
          _
      $region12: #{tpu_custom_call.1} parent=5 // pred_fallthru
        _
      %p346 = scmp.lt.s32.totalorder %s29, 2
      // Predicated region
      $region29: #{tpu_custom_call.1} parent=5 // pred_check
        %p347 = pneg %p346
      $region30: #{tpu_custom_call.1} parent=5 // pred_check_branch
        %349 = sbr.rel (%p347) target = $region32
      $region31: #{tpu_custom_call.1} parent=5 // pred_region
        // Predicated region
        $region33: #{tpu_custom_call.1} parent=31 // pred_check
          %p350 = pneg %p63
        $region34: #{tpu_custom_call.1} parent=31 // pred_check_branch
          %352 = sbr.rel (%p350) target = $region36
        $region35: #{tpu_custom_call.1} parent=31 // pred_region
          %s353 = sand.u32 %s53, 1
          %s354 = scalar_lea.sflag [#allocation3], %s353
          %s355 = sand.u32 %s53, 1
          %s356 = smul.addr %s355, 16
          %s357 = scalar_lea.vmem [#allocation2], %s356
          %s358 = smul.u32 2, %s37
          %s360 = ssub.s32 256, 256
          %361 = vsyncadd %s354, %s360
          %s362 = smul.addr %s36, 2
          %s363 = sadd.s32 %s358, %s362
          %s364 = smul.addr %s363, 128
          %s365 = scalar_lea.hbm %s0, %s364
          %s366 = sshll.u32 %s357, 4
          %s367 = int_to_ptr.vmem [resolvable:$true] %s366
          %372 = dma.hbm_to_vmem [thread:$0]  %s365, 256, %s367, %s354, 128, 128, 8
        $region36: #{tpu_custom_call.1} parent=31 // pred_fallthru
          _
      $region32: #{tpu_custom_call.1} parent=5 // pred_fallthru
        _
      %p373 = scmp.le.s32.totalorder 1, %s29
      %p374 = scmp.lt.s32.totalorder %s29, 3
      %p375 = pnand %p373, %p374
      %p376 = pneg %p375
      // Predicated region
      $region37: #{tpu_custom_call.1} parent=5 // pred_check
        _
      $region38: #{tpu_custom_call.1} parent=5 // pred_check_branch
        %378 = sbr.rel (%p375) target = $region40
      $region39: #{tpu_custom_call.1} parent=5 // pred_region
        %s379 = ssub.s32 %s29, 1
        %s380 = sand.u32 %s56, 1
        %s381 = scalar_lea.sflag [#allocation3], %s380
        %s382 = sand.u32 %s56, 1
        %s383 = smul.addr %s382, 16
        %s384 = scalar_lea.vmem [#allocation2], %s383
        // Predicated region
        $region41: #{tpu_custom_call.1} parent=39 // pred_check
          %p385 = pneg %p69
        $region42: #{tpu_custom_call.1} parent=39 // pred_check_branch
          %387 = sbr.rel (%p385) target = $region44
        $region43: #{tpu_custom_call.1} parent=39 // pred_region
          %388 = dma.done %s381, 256
        $region44: #{tpu_custom_call.1} parent=39 // pred_fallthru
          _
        // Predicated region
        $region45: #{tpu_custom_call.1} parent=39 // pred_check
          %p389 = pneg %p95
        $region46: #{tpu_custom_call.1} parent=39 // pred_check_branch
          %391 = sbr.rel (%p389) target = $region48
        $region47: #{tpu_custom_call.1} parent=39 // pred_region
          %392 = dma.done [#allocation6], 128
        $region48: #{tpu_custom_call.1} parent=39 // pred_fallthru
          _
        // Predicated region
        $region49: #{tpu_custom_call.1} parent=39 // pred_check
          %p393 = pneg %p121
        $region50: #{tpu_custom_call.1} parent=39 // pred_check_branch
          %395 = sbr.rel (%p393) target = $region52
        $region51: #{tpu_custom_call.1} parent=39 // pred_region
          %396 = dma.done [#allocation6], 128
        $region52: #{tpu_custom_call.1} parent=39 // pred_fallthru
          _
        // Predicated region
        $region53: #{tpu_custom_call.1} parent=39 // pred_check
          %p397 = pneg %p142
        $region54: #{tpu_custom_call.1} parent=39 // pred_check_branch
          %399 = sbr.rel (%p397) target = $region56
        $region55: #{tpu_custom_call.1} parent=39 // pred_region
          %400 = dma.done [#allocation9], 512
        $region56: #{tpu_custom_call.1} parent=39 // pred_fallthru
          _
        // Predicated region
        $region57: #{tpu_custom_call.1} parent=39 // pred_check
          %p401 = pneg %p163
        $region58: #{tpu_custom_call.1} parent=39 // pred_check_branch
          %403 = sbr.rel (%p401) target = $region60
        $region59: #{tpu_custom_call.1} parent=39 // pred_region
          %404 = dma.done [#allocation9], 16
        $region60: #{tpu_custom_call.1} parent=39 // pred_fallthru
          _
        %s405 = sand.u32 %s56, 1
        %s406 = scalar_lea.sflag [#allocation3], %s405
        %s407 = sand.u32 %s56, 1
        %s408 = smul.addr %s407, 16
        %s409 = scalar_lea.vmem [#allocation2], %s408
        %p410 = pneg %p69
        %p411 = pneg %p66
        %p412 = pneg %p95
        %p413 = pneg %p92
        %p414 = pneg %p121
        %p415 = pneg %p118
        %p416 = pneg %p142
        %p417 = pneg %p139
        %p418 = pneg %p163
        %p419 = pneg %p160
        %p420 = pneg %p191
        %p421 = pneg %p188
        %s422 = sand.u32 %s178, 1
        %s423 = scalar_lea.sflag [#allocation4], %s422
        %s424 = sand.u32 %s178, 1
        %s425 = smul.addr %s424, 8
        %s426 = scalar_lea.vmem [#allocation11], %s425
        %p427 = pneg %p219
        %p428 = pneg %p216
        %s429 = sand.u32 %s34, 1
        %s430 = scalar_lea.sflag [#allocation13], %s429
        %s431 = sand.u32 %s206, 1
        %s432 = smul.addr %s431, 8
        %s433 = scalar_lea.vmem [#allocation12], %s432
        %p434 = pneg %p247
        %p435 = pneg %p244
        %s436 = sand.u32 %s34, 1
        %s437 = scalar_lea.sflag [#allocation13], %s436
        %s438 = sand.u32 %s234, 1
        %s439 = smul.addr %s438, 8
        %s440 = scalar_lea.vmem [#allocation14], %s439
        %p441 = pneg %p275
        %p442 = pneg %p272
        %s443 = sand.u32 %s262, 1
        %s444 = scalar_lea.sflag [#allocation16], %s443
        %s445 = sand.u32 %s262, 1
        %s446 = smul.addr %s445, 16
        %s447 = scalar_lea.vmem [#allocation15], %s446
        %s448 = smul.u32 2, %s39
        %s449 = smul.u32 2, %s39
        %s450 = smul.u32 2, %s39
        %s451 = smul.u32 2, %s39
        %s452 = smul.u32 2, %s39
        %s453 = smul.u32 2, %s39
        %s454 = smul.u32 2, %s39
        %v456 = vld [vmem:[%s384] sm:$0xff]
        %v457 = vld [vmem:[%s384 + $0x8] sm:$0x3]
        %v458 = vpack.c.bf16 %v457, %v456
        %v459 = vld [vmem:[#allocation8] sm:$0xff]
        %v460 = vld [vmem:[#allocation8 + $0x8] sm:$0xff]
        %v461 = vld [vmem:[#allocation8 + $0x10] sm:$0xff]
        %v462 = vld [vmem:[#allocation8 + $0x18] sm:$0xff]
        %v467 = vunpack.c.l.b16 %v459
        %v468 = vunpack.c.h.b16 %v459
        %v469 = vunpack.c.l.b16 %v460
        %v470 = vunpack.c.h.b16 %v460
        %v471 = vunpack.c.l.b16 %v461
        %v472 = vunpack.c.h.b16 %v461
        %v473 = vunpack.c.l.b16 %v462
        %v474 = vunpack.c.h.b16 %v462
        %v475 = vpack.c.b16 %v469, %v467
        %v476 = vpack.c.b16 %v470, %v468
        %v477 = vpack.c.b16 %v473, %v471
        %v478 = vpack.c.b16 %v474, %v472
        %vm483 = vcmask 261120
        %v485 = vsel %vm483, %v458, 0
        %487 = vmatprep.subr.bf16.mxu0 %v476
        %488 = vmatpush1.bf16.msra.mxu0 %v475
        %489 = vmatprep.subr.bf16.mxu0 %v478
        %490 = vmatpush1.bf16.msra.mxu0 %v477
        %491 = vmatprep.subr.bf16.mxu0 0
        %492 = vmatpush1.bf16.msra.mxu0 0
        %493 = vmatprep.subr.bf16.mxu0 0
        %494 = vmatpush1.bf16.msra.mxu0 0
        %495 = vmatprep.subr.bf16.mxu0 0
        %496 = vmatpush1.bf16.msra.mxu0 0
        %497 = vmatprep.subr.bf16.mxu0 0
        %498 = vmatpush1.bf16.msra.mxu0 0
        %499 = vmatprep.subr.bf16.mxu0 0
        %500 = vmatpush1.bf16.msra.mxu0 0
        %501 = vmatprep.subr.bf16.mxu0 0
        %502 = vmatpush1.bf16.msra.mxu0 0
        %503 = vmatprep.subr.bf16.mxu0 0
        %504 = vmatpush1.bf16.msra.mxu0 0
        %505 = vmatprep.subr.bf16.mxu0 0
        %506 = vmatpush1.bf16.msra.mxu0 0
        %507 = vmatprep.subr.bf16.mxu0 0
        %508 = vmatpush1.bf16.msra.mxu0 0
        %509 = vmatprep.subr.bf16.mxu0 0
        %510 = vmatpush1.bf16.msra.mxu0 0
        %511 = vmatprep.subr.bf16.mxu0 0
        %512 = vmatpush1.bf16.msra.mxu0 0
        %513 = vmatprep.subr.bf16.mxu0 0
        %514 = vmatpush1.bf16.msra.mxu0 0
        %515 = vmatprep.subr.bf16.mxu0 0
        %516 = vmatpush1.bf16.msra.mxu0 0
        %517 = vmatprep.subr.bf16.mxu0 0
        %518 = vmatpush1.bf16.msra.mxu0 0
        %519 = vmatprep.mubr.bf16.mxu0 0
        %520 = vmatmul.mubr.bf16.gmra.mrb[0].mxu0 %v485
        %v521 = vpop.f32.mrb[0].mxu0
        %v522 = vadd.f32 0.0, %v521
        %v523 = vpop.f32.mrb[0].mxu0
        %v524 = vadd.f32 0.0, %v523
        %v525 = vpop.f32.mrb[0].mxu0
        %v526 = vadd.f32 0.0, %v525
        %v527 = vpop.f32.mrb[0].mxu0
        %v528 = vadd.f32 0.0, %v527
        %529 = vdwg.mxu0
        %v530 = vld [vmem:[#allocation10] sm:$0x1]
        %v532 = vlaneseq
        %v533 = vshrl.u32 %v532, 7
        %v534 = vsub.s32 0, %v533
        %v535 = vrot.slane %v530, %v534
        %536 = vrot.lane.b32.xlu0 %v535, 96
        %v537 = vpop.permute.xlu0 %536
        %v539 = vadd.f32 %v522, %v537
        %v540 = vadd.f32 %v524, %v537
        %v541 = vadd.f32 %v526, %v537
        %v542 = vadd.f32 %v528, %v537
        %v543 = vxor.u32 %v539, 2147483648
        %v544 = vxor.u32 %v540, 2147483648
        %v545 = vxor.u32 %v541, 2147483648
        %v546 = vxor.u32 %v542, 2147483648
        %v547 = vmul.f32 %v543, 1.442695
        %v548 = vpow.pop %v547
        %v549 = vmul.f32 %v544, 1.442695
        %v550 = vpow.pop %v549
        %v551 = vmul.f32 %v545, 1.442695
        %v552 = vpow.pop %v551
        %v553 = vmul.f32 %v546, 1.442695
        %v554 = vpow.pop %v553
        %v555 = vadd.f32 %v548, 1.0
        %v556 = vadd.f32 %v550, 1.0
        %v557 = vadd.f32 %v552, 1.0
        %v558 = vadd.f32 %v554, 1.0
        %v559 = vrcp.pop %v555
        %v560 = vmul.f32 1.0, %v559
        %v561 = vrcp.pop %v556
        %v562 = vmul.f32 1.0, %v561
        %v563 = vrcp.pop %v557
        %v564 = vmul.f32 1.0, %v563
        %v565 = vrcp.pop %v558
        %v566 = vmul.f32 1.0, %v565
        %571 = vrot.lane.b32.xlu0 %v560, 32
        %v572 = vpop.permute.xlu0 %571
        %573 = vrot.lane.b32.xlu0 %v562, 32
        %v574 = vpop.permute.xlu0 %573
        %575 = vrot.lane.b32.xlu0 %v564, 32
        %v576 = vpop.permute.xlu0 %575
        %577 = vrot.lane.b32.xlu0 %v566, 32
        %v578 = vpop.permute.xlu0 %577
        %v579 = vsel %vm483, %v572, %v574
        %v580 = vsel %vm483, %v576, %v578
        %583 = vst [vmem:[%s447] sm:$0xff] %v579
        %584 = vst [vmem:[%s447 + $0x8] sm:$0x3] %v580
        %v585 = vld [vmem:[#allocation5] sm:$0xf]
        %v586 = vld [vmem:[#allocation5 + $0x4] sm:$0x1]
        %v587 = vunpack.c.l.bf16 %v585
        %v588 = vunpack.c.l.bf16 %v586
        %v589 = vld [vmem:[#allocation7] sm:$0xf]
        %v590 = vld [vmem:[#allocation7 + $0x4] sm:$0x1]
        %v591 = vunpack.c.l.bf16 %v589
        %v592 = vunpack.c.l.bf16 %v590
        %595 = vrot.lane.b32.xlu0 %v522, 112
        %v596 = vpop.permute.xlu0 %595
        %597 = vrot.lane.b32.xlu0 %v526, 112
        %v598 = vpop.permute.xlu0 %597
        %601 = vrot.lane.b32.xlu0 %v522, 16
        %v602 = vpop.permute.xlu0 %601
        %603 = vrot.lane.b32.xlu0 %v526, 16
        %v604 = vpop.permute.xlu0 %603
        %vm607 = vcmask 130048
        %v608 = vsel %vm607, %v596, %v602
        %v609 = vsel %vm607, %v598, %v604
        %v610 = vmul.f32 %v522, %v587
        %v611 = vmul.f32 %v526, %v588
        %v612 = vmul.f32 %v608, %v591
        %v613 = vmul.f32 %v609, %v592
        %v614 = vadd.f32 %v610, %v612
        %v615 = vadd.f32 %v611, %v613
        %v616 = vpack.c.bf16 %v615, %v614
        %v618 = vunpack.c.l.b16 %v616
        %v619 = vunpack.c.h.b16 %v616
        %v620 = vpack.c.b16 %v618, %v618
        %v621 = vpack.c.b16 %v619, %v619
        %vm624 = vcmask 257024
        %625 = vst.msk [vmem:[%s426] sm:$0xf] %vm624, %v620
        %vm626 = vcmask 253952
        %627 = vst.msk [vmem:[%s426 + $0x4] sm:$0x1] %vm626, %v621
        %628 = vrot.lane.b32.xlu0 %v522, 80
        %v629 = vpop.permute.xlu0 %628
        %630 = vrot.lane.b32.xlu0 %v526, 80
        %v631 = vpop.permute.xlu0 %630
        %v634 = vsel %vm607, %v629, %v596
        %v635 = vsel %vm607, %v631, %v598
        %638 = vrot.lane.b32.xlu0 %v587, 32
        %v639 = vpop.permute.xlu0 %638
        %640 = vrot.lane.b32.xlu0 %v588, 32
        %v641 = vpop.permute.xlu0 %640
        %v644 = vmul.f32 %v522, %v639
        %v645 = vmul.f32 %v526, %v641
        %v646 = vmul.f32 %v634, %v591
        %v647 = vmul.f32 %v635, %v592
        %650 = vrot.lane.b32.xlu0 %v646, 32
        %v651 = vpop.permute.xlu0 %650
        %652 = vrot.lane.b32.xlu0 %v647, 32
        %v653 = vpop.permute.xlu0 %652
        %v656 = vadd.f32 %v644, %v651
        %v657 = vadd.f32 %v645, %v653
        %v658 = vpack.c.bf16 %v657, %v656
        %v660 = vunpack.c.l.b16 %v658
        %v661 = vunpack.c.h.b16 %v658
        %v662 = vpack.c.b16 %v660, %v660
        %v663 = vpack.c.b16 %v661, %v661
        %664 = vrot.lane.b32.xlu0 %v662, 96
        %v665 = vpop.permute.xlu0 %664
        %666 = vrot.lane.b32.xlu0 %v663, 96
        %v667 = vpop.permute.xlu0 %666
        %670 = vst.msk [vmem:[%s433] sm:$0xf] %vm624, %v665
        %671 = vst.msk [vmem:[%s433 + $0x4] sm:$0x1] %vm626, %v667
        %672 = vrot.lane.b32.xlu0 %v522, 48
        %v673 = vpop.permute.xlu0 %672
        %674 = vrot.lane.b32.xlu0 %v526, 48
        %v675 = vpop.permute.xlu0 %674
        %v678 = vsel %vm607, %v673, %v629
        %v679 = vsel %vm607, %v675, %v631
        %680 = vrot.lane.b32.xlu0 %v587, 64
        %v681 = vpop.permute.xlu0 %680
        %682 = vrot.lane.b32.xlu0 %v588, 64
        %v683 = vpop.permute.xlu0 %682
        %v686 = vmul.f32 %v522, %v681
        %v687 = vmul.f32 %v526, %v683
        %v688 = vmul.f32 %v678, %v591
        %v689 = vmul.f32 %v679, %v592
        %692 = vrot.lane.b32.xlu0 %v688, 64
        %v693 = vpop.permute.xlu0 %692
        %694 = vrot.lane.b32.xlu0 %v689, 64
        %v695 = vpop.permute.xlu0 %694
        %v698 = vadd.f32 %v686, %v693
        %v699 = vadd.f32 %v687, %v695
        %v700 = vpack.c.bf16 %v699, %v698
        %v702 = vunpack.c.l.b16 %v700
        %v703 = vunpack.c.h.b16 %v700
        %v704 = vpack.c.b16 %v702, %v702
        %v705 = vpack.c.b16 %v703, %v703
        %706 = vrot.lane.b32.xlu0 %v704, 64
        %v707 = vpop.permute.xlu0 %706
        %708 = vrot.lane.b32.xlu0 %v705, 64
        %v709 = vpop.permute.xlu0 %708
        %712 = vst.msk [vmem:[%s440] sm:$0xf] %vm624, %v707
        %713 = vst.msk [vmem:[%s440 + $0x4] sm:$0x1] %vm626, %v709
        %s714 = sand.u32 %s178, 1
        %s715 = scalar_lea.sflag [#allocation4], %s714
        %s716 = sand.u32 %s178, 1
        %s717 = smul.addr %s716, 8
        %s718 = scalar_lea.vmem [#allocation11], %s717
        %s719 = sand.u32 %s34, 1
        %s720 = scalar_lea.sflag [#allocation13], %s719
        %s721 = sand.u32 %s206, 1
        %s722 = smul.addr %s721, 8
        %s723 = scalar_lea.vmem [#allocation12], %s722
        %s724 = sand.u32 %s34, 1
        %s725 = scalar_lea.sflag [#allocation13], %s724
        %s726 = sand.u32 %s234, 1
        %s727 = smul.addr %s726, 8
        %s728 = scalar_lea.vmem [#allocation14], %s727
        %s729 = sand.u32 %s262, 1
        %s730 = scalar_lea.sflag [#allocation16], %s729
        %s731 = sand.u32 %s262, 1
        %s732 = smul.addr %s731, 16
        %s733 = scalar_lea.vmem [#allocation15], %s732
        // Predicated region
        $region61: #{tpu_custom_call.1} parent=39 // pred_check
          %p734 = pneg %p188
        $region62: #{tpu_custom_call.1} parent=39 // pred_check_branch
          %736 = sbr.rel (%p734) target = $region64
        $region63: #{tpu_custom_call.1} parent=39 // pred_region
          %s737 = smul.u32 2, %s39
          %s739 = ssub.s32 128, 128
          %740 = vsyncadd %s715, %s739
          %s741 = smul.addr %s38, 2
          %s742 = sadd.s32 %s737, %s741
          %s743 = smul.addr %s742, 64
          %s744 = scalar_lea.hbm %s5, %s743
          %s745 = sshll.u32 %s718, 4
          %s746 = int_to_ptr.vmem [resolvable:$true] %s745
          %751 = dma.vmem_to_hbm [thread:$0]  %s746, 128, %s744, %s715, 64, 64, 4
        $region64: #{tpu_custom_call.1} parent=39 // pred_fallthru
          _
        // Predicated region
        $region65: #{tpu_custom_call.1} parent=39 // pred_check
          %p752 = pneg %p216
        $region66: #{tpu_custom_call.1} parent=39 // pred_check_branch
          %754 = sbr.rel (%p752) target = $region68
        $region67: #{tpu_custom_call.1} parent=39 // pred_region
          %s755 = smul.u32 2, %s39
          %s757 = ssub.s32 128, 128
          %758 = vsyncadd %s720, %s757
          %s759 = smul.addr %s38, 2
          %s760 = sadd.s32 %s755, %s759
          %s761 = smul.addr %s760, 64
          %s762 = scalar_lea.hbm %s6, %s761
          %s763 = sshll.u32 %s723, 4
          %s764 = int_to_ptr.vmem [resolvable:$true] %s763
          %769 = dma.vmem_to_hbm [thread:$0]  %s764, 128, %s762, %s720, 64, 64, 4
        $region68: #{tpu_custom_call.1} parent=39 // pred_fallthru
          _
        // Predicated region
        $region69: #{tpu_custom_call.1} parent=39 // pred_check
          %p770 = pneg %p244
        $region70: #{tpu_custom_call.1} parent=39 // pred_check_branch
          %772 = sbr.rel (%p770) target = $region72
        $region71: #{tpu_custom_call.1} parent=39 // pred_region
          %s773 = smul.u32 2, %s39
          %s775 = ssub.s32 128, 128
          %776 = vsyncadd %s725, %s775
          %s777 = smul.addr %s38, 2
          %s778 = sadd.s32 %s773, %s777
          %s779 = smul.addr %s778, 64
          %s780 = scalar_lea.hbm %s7, %s779
          %s781 = sshll.u32 %s728, 4
          %s782 = int_to_ptr.vmem [resolvable:$true] %s781
          %787 = dma.vmem_to_hbm [thread:$0]  %s782, 128, %s780, %s725, 64, 64, 4
        $region72: #{tpu_custom_call.1} parent=39 // pred_fallthru
          _
        // Predicated region
        $region73: #{tpu_custom_call.1} parent=39 // pred_check
          %p788 = pneg %p272
        $region74: #{tpu_custom_call.1} parent=39 // pred_check_branch
          %790 = sbr.rel (%p788) target = $region76
        $region75: #{tpu_custom_call.1} parent=39 // pred_region
          %s791 = smul.u32 2, %s39
          %s793 = ssub.s32 256, 256
          %794 = vsyncadd %s730, %s793
          %s795 = smul.addr %s38, 2
          %s796 = sadd.s32 %s791, %s795
          %s797 = smul.addr %s796, 128
          %s798 = scalar_lea.hbm %s8, %s797
          %s799 = sshll.u32 %s733, 4
          %s800 = int_to_ptr.vmem [resolvable:$true] %s799
          %805 = dma.vmem_to_hbm [thread:$0]  %s800, 256, %s798, %s730, 128, 128, 8
        $region76: #{tpu_custom_call.1} parent=39 // pred_fallthru
          _
      $region40: #{tpu_custom_call.1} parent=5 // pred_fallthru
        _
      %p806 = scmp.le.s32.totalorder 2, %s29
      // Predicated region
      $region77: #{tpu_custom_call.1} parent=5 // pred_check
        %p807 = pneg %p806
      $region78: #{tpu_custom_call.1} parent=5 // pred_check_branch
        %809 = sbr.rel (%p807) target = $region80
      $region79: #{tpu_custom_call.1} parent=5 // pred_region
        %s810 = ssub.s32 %s29, 2
        // Predicated region
        $region81: #{tpu_custom_call.1} parent=79 // pred_check
          %p811 = pneg %p194
        $region82: #{tpu_custom_call.1} parent=79 // pred_check_branch
          %813 = sbr.rel (%p811) target = $region84
        $region83: #{tpu_custom_call.1} parent=79 // pred_region
          %s814 = sand.u32 %s179, 1
          %s815 = scalar_lea.sflag [#allocation4], %s814
          %s816 = sand.u32 %s179, 1
          %s817 = smul.addr %s816, 8
          %s818 = scalar_lea.vmem [#allocation11], %s817
          %819 = dma.done %s815, 128
        $region84: #{tpu_custom_call.1} parent=79 // pred_fallthru
          _
        // Predicated region
        $region85: #{tpu_custom_call.1} parent=79 // pred_check
          %p820 = pneg %p222
        $region86: #{tpu_custom_call.1} parent=79 // pred_check_branch
          %822 = sbr.rel (%p820) target = $region88
        $region87: #{tpu_custom_call.1} parent=79 // pred_region
          %s823 = sand.u32 %s35, 1
          %s824 = scalar_lea.sflag [#allocation13], %s823
          %s825 = sand.u32 %s207, 1
          %s826 = smul.addr %s825, 8
          %s827 = scalar_lea.vmem [#allocation12], %s826
          %828 = dma.done %s824, 128
        $region88: #{tpu_custom_call.1} parent=79 // pred_fallthru
          _
        // Predicated region
        $region89: #{tpu_custom_call.1} parent=79 // pred_check
          %p829 = pneg %p250
        $region90: #{tpu_custom_call.1} parent=79 // pred_check_branch
          %831 = sbr.rel (%p829) target = $region92
        $region91: #{tpu_custom_call.1} parent=79 // pred_region
          %s832 = sand.u32 %s35, 1
          %s833 = scalar_lea.sflag [#allocation13], %s832
          %s834 = sand.u32 %s235, 1
          %s835 = smul.addr %s834, 8
          %s836 = scalar_lea.vmem [#allocation14], %s835
          %837 = dma.done %s833, 128
        $region92: #{tpu_custom_call.1} parent=79 // pred_fallthru
          _
        // Predicated region
        $region93: #{tpu_custom_call.1} parent=79 // pred_check
          %p838 = pneg %p278
        $region94: #{tpu_custom_call.1} parent=79 // pred_check_branch
          %840 = sbr.rel (%p838) target = $region96
        $region95: #{tpu_custom_call.1} parent=79 // pred_region
          %s841 = sand.u32 %s263, 1
          %s842 = scalar_lea.sflag [#allocation16], %s841
          %s843 = sand.u32 %s263, 1
          %s844 = smul.addr %s843, 16
          %s845 = scalar_lea.vmem [#allocation15], %s844
          %846 = dma.done %s842, 256
        $region96: #{tpu_custom_call.1} parent=79 // pred_fallthru
          _
      $region80: #{tpu_custom_call.1} parent=5 // pred_fallthru
        _
    $region6: #{tpu_custom_call.1} parent=1 // loop_footer
      %s33 = sadd.s32 1, %s29
    $region7: #{tpu_custom_call.1} parent=1 // loop_footer_branch
      %28 = sbr.rel target = $region3
    $region8: #{tpu_custom_call.1} parent=1 // loop_exit
      _
    %847 = vsyncpa [#allocation3], 1
    %s848 = scalar_lea.sflag [#allocation3], 1
    %849 = vsyncpa %s848, 1
    %850 = vsyncpa [#allocation6], 1
    %851 = vsyncpa [#allocation9], 1
    %852 = vsyncpa [#allocation4], 1
    %s853 = scalar_lea.sflag [#allocation4], 1
    %854 = vsyncpa %s853, 1
    %855 = vsyncpa [#allocation13], 1
    %s856 = scalar_lea.sflag [#allocation13], 1
    %857 = vsyncpa %s856, 1
    %858 = vsyncpa [#allocation16], 1
    %s859 = scalar_lea.sflag [#allocation16], 1
    %860 = vsyncpa %s859, 1

</llo_original>
